<compile_context>
chip_gen: v5e
topology: v5e:2x2
jax: 0.10.0
libtpu: 0.0.40
codegen_flags: <defaults>
</compile_context>

<pallas_src>
from functools import partial

import jax
import jax.numpy as jnp
from jax import lax
from jax.experimental import pallas as pl
from jax.experimental.pallas import tpu as pltpu


# ---------------------------------------------------------------------------
# Elementwise activations (f32 math on all chip generations)
# ---------------------------------------------------------------------------
def _elu(x):
    # nn.ELU (alpha=1): x if x > 0 else exp(x) - 1.
    # exp() of the unselected positive lanes may reach +inf; jnp.where simply
    # discards them (no traps on TPU), so no clamp (saves one VPU op / vreg).
    return jnp.where(x > 0, x, jnp.exp(x) - 1.0)


def _sigmoid(x, approx):
    # 1 / (1 + exp(-x)).  exp and (approx) reciprocal ride the otherwise-idle
    # EUP slot.  Clamp the exp argument so the approximate reciprocal never
    # sees +inf for very negative inputs.
    e = jnp.exp(-jnp.maximum(x, -60.0))
    if approx:
        return pl.reciprocal(1.0 + e, approx=True)
    return 1.0 / (1.0 + e)


# ---------------------------------------------------------------------------
# Kernel: one feature-major batch tile (D0, TILE_B), chunked along the lanes
# ---------------------------------------------------------------------------
def _autoencoder_kernel(x_ref,
                        w1, b1, w2, b2, w3, b3, w4, b4,
                        o_ref,
                        *, chunk, n_chunks, approx_sigmoid):
    sig = partial(_sigmoid, approx=approx_sigmoid)

    def layer(h, w_ref, b_ref, act):
        # MXU matmul in the weights' storage dtype, f32 accumulation.
        acc = jnp.dot(w_ref[...], h.astype(w_ref.dtype),
                      preferred_element_type=jnp.float32)
        acc = acc + b_ref[...].astype(jnp.float32)   # (out, 1) broadcast on lanes
        return act(acc)

    def net(h):
        h = layer(h, w1, b1, _elu)     # encode
        h = layer(h, w2, b2, sig)
        h = layer(h, w3, b3, _elu)     # decode
        h = layer(h, w4, b4, sig)
        return h

    if n_chunks == 1:
        o_ref[...] = net(x_ref[...]).astype(o_ref.dtype)
    else:
        def body(c, carry):
            col0 = pl.multiple_of(c * chunk, chunk)
            h = net(x_ref[:, pl.ds(col0, chunk)])
            o_ref[:, pl.ds(col0, chunk)] = h.astype(o_ref.dtype)
            return carry
        lax.fori_loop(0, n_chunks, body, 0)


# ---------------------------------------------------------------------------
# Tiling heuristics
# ---------------------------------------------------------------------------
def _round_up(n, m):
    return ((n + m - 1) // m) * m


def _choose_tile_b(batch, d0, itemsize, requested=None):
    """Lane-tile size: ~1 MiB blocks, >=2 grid steps when possible (v7x
    megacore), never exceeding the batch, no padding ever required."""
    if batch <= 128:
        return batch                       # single block spanning the full lane extent
    if requested is None:
        requested = (1 << 20) // max(1, d0 * itemsize)     # ~1 MiB per block
    t = max(128, (min(int(requested), 32768) // 128) * 128)
    # Keep at least two grid steps so both v7x TensorCores get work.
    t = min(t, max(128, _round_up((batch + 1) // 2, 128)))
    return t


def _choose_chunk(tile_b):
    for c in (512, 256, 128):
        if tile_b % c == 0:
            return c
    return tile_b                           # tiny (batch <= 128) case


# ---------------------------------------------------------------------------
# Fast path: feature-major (D0, batch) -> (D0, batch), zero wrapper copies
# ---------------------------------------------------------------------------
def autoencoder_forward_fm(xt, params, *, tile_b=None, approx_sigmoid=True,
                           mxu_dtype=None, interpret=False):
    """xt: (D0, batch).  params: [(W, b)] * 4 with W (out, in), b (out, 1)."""
    (w1, b1), (w2, b2), (w3, b3), (w4, b4) = params
    d0, batch = xt.shape
    d1, d2 = w1.shape[0], w2.shape[0]
    assert w1.shape == (d1, d0) and w2.shape == (d2, d1)
    assert w3.shape == (d1, d2) and w4.shape == (d0, d1)

    if mxu_dtype is not None:
        # Review item: feed resident weights to the MXU in bf16 (one-time tiny
        # cast); biases stay in their stored dtype (added on the f32 acc).
        w1, w2, w3, w4 = (w.astype(mxu_dtype) for w in (w1, w2, w3, w4))

    itemsize = xt.dtype.itemsize
    tile_b = _choose_tile_b(batch, d0, itemsize, tile_b)
    chunk = _choose_chunk(tile_b)
    n_chunks = tile_b // chunk
    grid = (pl.cdiv(batch, tile_b),)        # ragged final block handled by Pallas

    x_spec = pl.BlockSpec((d0, tile_b), lambda i: (0, i))
    out_spec = pl.BlockSpec((d0, tile_b), lambda i: (0, i))

    def resident(arr):
        # Full-array block, constant index_map -> fetched once, stays in VMEM.
        return pl.BlockSpec(arr.shape, lambda i: (0, 0))

    flat_params, param_specs, param_bytes = [], [], 0
    for w, b in ((w1, b1), (w2, b2), (w3, b3), (w4, b4)):
        flat_params += [w, b]
        param_specs += [resident(w), resident(b)]
        param_bytes += w.size * w.dtype.itemsize + b.size * b.dtype.itemsize

    # Double-buffered in + out blocks plus headroom; safe on v5e (16 MiB scoped
    # default raised, 128 MiB physical) and v7x (64 MiB physical).
    block_bytes = d0 * tile_b * itemsize
    vmem_limit = int(min(48 << 20, max(32 << 20, 6 * block_bytes)))

    cost = pl.CostEstimate(
        flops=4 * batch * (d0 * d1 + d1 * d2),
        transcendentals=batch * (2 * d1 + d2 + d0),
        bytes_accessed=2 * batch * d0 * itemsize + param_bytes,
    )

    kernel = partial(_autoencoder_kernel, chunk=chunk, n_chunks=n_chunks,
                     approx_sigmoid=approx_sigmoid)

    return pl.pallas_call(
        kernel,
        out_shape=jax.ShapeDtypeStruct((d0, batch), xt.dtype),
        grid=grid,
        in_specs=[x_spec] + param_specs,
        out_specs=out_spec,
        compiler_params=pltpu.CompilerParams(
            dimension_semantics=("parallel",),
            vmem_limit_bytes=vmem_limit),
        cost_estimate=cost,
        interpret=interpret,
    )(xt, *flat_params)


# ---------------------------------------------------------------------------
# PyTorch-layout compatibility wrapper: x (batch, D0) -> (batch, D0)
# ---------------------------------------------------------------------------
def autoencoder_forward(x, params, **kwargs):
    """NOTE (perf): these two transposes are materialized HBM copies.  For
    bandwidth-bound use, keep the data feature-major end-to-end and call
    autoencoder_forward_fm directly (review item #1)."""
    return autoencoder_forward_fm(x.T, params, **kwargs).T


# ---------------------------------------------------------------------------
# Params / reference
# ---------------------------------------------------------------------------
def init_params(key, layers, dtype=jnp.float32):
    """PyTorch-style Linear init; W stored (out_features, in_features),
    b stored (out_features, 1)."""
    dims = [(layers[1], layers[0]), (layers[2], layers[1]),
            (layers[1], layers[2]), (layers[0], layers[1])]
    params = []
    keys = jax.random.split(key, 2 * len(dims))
    for idx, (fan_out, fan_in) in enumerate(dims):
        scale = 1.0 / (fan_in ** 0.5)
        w = jax.random.uniform(keys[2 * idx], (fan_out, fan_in),
                               minval=-scale, maxval=scale, dtype=jnp.float32)
        b = jax.random.uniform(keys[2 * idx + 1], (fan_out, 1),
                               minval=-scale, maxval=scale, dtype=jnp.float32)
        params.append((w.astype(dtype), b.astype(dtype)))
    return params


def reference_forward(x, params):
    """Pure-JAX reference, standard (batch, features) layout, f32 math."""
    h = x.astype(jnp.float32)

    def elu(v): return jnp.where(v > 0, v, jnp.exp(jnp.minimum(v, 0.0)) - 1.0)
    def sig(v): return 1.0 / (1.0 + jnp.exp(-v))

    acts = [elu, sig, elu, sig]
    for (w, b), act in zip(params, acts):
        h = act(h @ w.astype(jnp.float32).T + b.astype(jnp.float32)[:, 0])
    return h


# ---------------------------------------------------------------------------
# Self-test
# ---------------------------------------------------------------------------
if __name__ == "__main__":
    layers = [32, 16, 8]   # Autoencoder(layers=[32, 16, 8])
    key = jax.random.PRNGKey(0)
    k_x, k_p = jax.random.split(key)
    params = init_params(k_p, layers, dtype=jnp.float32)

    # --- small batch, exact path (f32 storage, exact sigmoid divide) ---
    batch = 8
    x_small = jax.random.normal(k_x, (batch, layers[0]), dtype=jnp.float32)
    ref_small = reference_forward(x_small, params)

    out_fm = jax.block_until_ready(
        autoencoder_forward_fm(x_small.T, params, approx_sigmoid=False))
    assert out_fm.shape == (layers[0], batch)
    assert jnp.allclose(out_fm.T, ref_small, atol=1e-5, rtol=1e-5), "f32 exact mismatch"

    out_bd = jax.block_until_ready(
        autoencoder_forward(x_small, params, approx_sigmoid=False))
    assert out_bd.shape == (batch, layers[0])
    assert jnp.allclose(out_bd, ref_small, atol=1e-5, rtol=1e-5), "compat wrapper mismatch"

    # --- larger batch, default perf path (feature-major, approx sigmoid) ---
    batch = 2048
    xt = jax.random.normal(k_x, (layers[0], batch), dtype=jnp.float32)  # feature-major
    ref = reference_forward(xt.T, params)
    out = jax.block_until_ready(autoencoder_forward_fm(xt, params))
    assert out.shape == (layers[0], batch)
    assert jnp.allclose(out.T, ref, atol=2e-2), "f32 approx-sigmoid mismatch"

    # --- ragged batch (no wrapper padding; boundary block OOB lanes dropped) ---
    batch_r = 300
    xt_r = jax.random.normal(k_x, (layers[0], batch_r), dtype=jnp.float32)
    ref_r = reference_forward(xt_r.T, params)
    out_r = jax.block_until_ready(autoencoder_forward_fm(xt_r, params))
    assert out_r.shape == (layers[0], batch_r)
    assert jnp.allclose(out_r.T, ref_r, atol=2e-2), "ragged-batch mismatch"

    # --- bf16 storage (halves HBM traffic of the dominant x/out streams) ---
    xt_bf = xt.astype(jnp.bfloat16)
    params_bf = [(w.astype(jnp.bfloat16), b.astype(jnp.bfloat16)) for w, b in params]
    ref_bf_in = reference_forward(xt_bf.astype(jnp.float32).T, params)
    out_bf = jax.block_until_ready(autoencoder_forward_fm(xt_bf, params_bf))
    assert jnp.allclose(out_bf.astype(jnp.float32).T, ref_bf_in, atol=5e-2), "bf16 mismatch"

    # --- f32 storage with bf16 MXU operands (review item; small/free win) ---
    out_w = jax.block_until_ready(
        autoencoder_forward_fm(xt, params, mxu_dtype=jnp.bfloat16))
    assert jnp.allclose(out_w.T, ref, atol=5e-2), "bf16-MXU-weights mismatch"

    print("KERNEL_OK")
</pallas_src>

<mosaic_0001>
module attributes {stable_mosaic.version = 11 : i64} {
  func.func @_autoencoder_kernel(%arg0: i32, %arg1: memref<32x8xf32, #tpu.memory_space<vmem>>, %arg2: memref<16x32xf32, #tpu.memory_space<vmem>>, %arg3: memref<16x1xf32, #tpu.memory_space<vmem>>, %arg4: memref<8x16xf32, #tpu.memory_space<vmem>>, %arg5: memref<8x1xf32, #tpu.memory_space<vmem>>, %arg6: memref<16x8xf32, #tpu.memory_space<vmem>>, %arg7: memref<16x1xf32, #tpu.memory_space<vmem>>, %arg8: memref<32x16xf32, #tpu.memory_space<vmem>>, %arg9: memref<32x1xf32, #tpu.memory_space<vmem>>, %arg10: memref<32x8xf32, #tpu.memory_space<vmem>>) attributes {dimension_semantics = [#tpu.dimension_semantics<parallel>], iteration_bounds = array<i64: 1>, scalar_prefetch = 0 : i64, scratch_operands = 0 : i64, tpu.core_type = #tpu.core_type<tc>, window_params = [{transform_indices = @transform_0, window_bounds = array<i64: 32, 8>}, {pipeline_mode = #tpu.pipeline_mode<synchronous>, transform_indices = @transform_1, window_bounds = array<i64: 16, 32>}, {pipeline_mode = #tpu.pipeline_mode<synchronous>, transform_indices = @transform_2, window_bounds = array<i64: 16, 1>}, {pipeline_mode = #tpu.pipeline_mode<synchronous>, transform_indices = @transform_3, window_bounds = array<i64: 8, 16>}, {pipeline_mode = #tpu.pipeline_mode<synchronous>, transform_indices = @transform_4, window_bounds = array<i64: 8, 1>}, {pipeline_mode = #tpu.pipeline_mode<synchronous>, transform_indices = @transform_5, window_bounds = array<i64: 16, 8>}, {pipeline_mode = #tpu.pipeline_mode<synchronous>, transform_indices = @transform_6, window_bounds = array<i64: 16, 1>}, {pipeline_mode = #tpu.pipeline_mode<synchronous>, transform_indices = @transform_7, window_bounds = array<i64: 32, 16>}, {pipeline_mode = #tpu.pipeline_mode<synchronous>, transform_indices = @transform_8, window_bounds = array<i64: 32, 1>}, {transform_indices = @transform_9, window_bounds = array<i64: 32, 8>}]} {
    %c0 = arith.constant 0 : index
    %c0_0 = arith.constant 0 : index
    %0 = vector.load %arg1[%c0, %c0_0] : memref<32x8xf32, #tpu.memory_space<vmem>>, vector<32x8xf32>
    %c0_1 = arith.constant 0 : index
    %c0_2 = arith.constant 0 : index
    %1 = vector.load %arg2[%c0_1, %c0_2] : memref<16x32xf32, #tpu.memory_space<vmem>>, vector<16x32xf32>
    %cst = arith.constant dense<0.000000e+00> : vector<16x8xf32>
    %2 = tpu.matmul %1, %0, %cst {dimension_numbers = #tpu.dot_dimension_numbers<[1], [0], [0], [1], [0, 0, 1, 1], [], []>} : vector<16x32xf32>, vector<32x8xf32>, vector<16x8xf32> -> vector<16x8xf32>
    %c0_3 = arith.constant 0 : index
    %c0_4 = arith.constant 0 : index
    %3 = vector.load %arg3[%c0_3, %c0_4] : memref<16x1xf32, #tpu.memory_space<vmem>>, vector<16x1xf32>
    %4 = vector.broadcast %3 : vector<16x1xf32> to vector<16x8xf32>
    %5 = arith.addf %2, %4 : vector<16x8xf32>
    %cst_5 = arith.constant 0.000000e+00 : f32
    %6 = vector.broadcast %cst_5 : f32 to vector<16x8xf32>
    %7 = arith.cmpf ogt, %5, %6 : vector<16x8xf32>
    %8 = math.exp %5 : vector<16x8xf32>
    %cst_6 = arith.constant 1.000000e+00 : f32
    %9 = vector.broadcast %cst_6 : f32 to vector<16x8xf32>
    %10 = arith.subf %8, %9 : vector<16x8xf32>
    %11 = arith.select %7, %5, %10 : vector<16x8xi1>, vector<16x8xf32>
    %c0_7 = arith.constant 0 : index
    %c0_8 = arith.constant 0 : index
    %12 = vector.load %arg4[%c0_7, %c0_8] : memref<8x16xf32, #tpu.memory_space<vmem>>, vector<8x16xf32>
    %cst_9 = arith.constant dense<0.000000e+00> : vector<8x8xf32>
    %13 = tpu.matmul %12, %11, %cst_9 {dimension_numbers = #tpu.dot_dimension_numbers<[1], [0], [0], [1], [0, 0, 1, 1], [], []>} : vector<8x16xf32>, vector<16x8xf32>, vector<8x8xf32> -> vector<8x8xf32>
    %c0_10 = arith.constant 0 : index
    %c0_11 = arith.constant 0 : index
    %14 = vector.load %arg5[%c0_10, %c0_11] : memref<8x1xf32, #tpu.memory_space<vmem>>, vector<8x1xf32>
    %15 = vector.broadcast %14 : vector<8x1xf32> to vector<8x8xf32>
    %16 = arith.addf %13, %15 : vector<8x8xf32>
    %cst_12 = arith.constant -6.000000e+01 : f32
    %17 = vector.broadcast %cst_12 : f32 to vector<8x8xf32>
    %18 = arith.maximumf %16, %17 : vector<8x8xf32>
    %cst_13 = arith.constant 0.000000e+00 : f32
    %19 = vector.broadcast %cst_13 : f32 to vector<8x8xf32>
    %20 = arith.subf %19, %18 : vector<8x8xf32>
    %21 = math.exp %20 : vector<8x8xf32>
    %cst_14 = arith.constant 1.000000e+00 : f32
    %22 = vector.broadcast %cst_14 : f32 to vector<8x8xf32>
    %23 = arith.addf %22, %21 : vector<8x8xf32>
    %cst_15 = arith.constant 1.000000e+00 : f32
    %24 = vector.broadcast %cst_15 : f32 to vector<8x8xf32>
    %25 = arith.divf %24, %23 : vector<8x8xf32>
    %c0_16 = arith.constant 0 : index
    %c0_17 = arith.constant 0 : index
    %26 = vector.load %arg6[%c0_16, %c0_17] : memref<16x8xf32, #tpu.memory_space<vmem>>, vector<16x8xf32>
    %cst_18 = arith.constant dense<0.000000e+00> : vector<16x8xf32>
    %27 = tpu.matmul %26, %25, %cst_18 {dimension_numbers = #tpu.dot_dimension_numbers<[1], [0], [0], [1], [0, 0, 1, 1], [], []>} : vector<16x8xf32>, vector<8x8xf32>, vector<16x8xf32> -> vector<16x8xf32>
    %c0_19 = arith.constant 0 : index
    %c0_20 = arith.constant 0 : index
    %28 = vector.load %arg7[%c0_19, %c0_20] : memref<16x1xf32, #tpu.memory_space<vmem>>, vector<16x1xf32>
    %29 = vector.broadcast %28 : vector<16x1xf32> to vector<16x8xf32>
    %30 = arith.addf %27, %29 : vector<16x8xf32>
    %cst_21 = arith.constant 0.000000e+00 : f32
    %31 = vector.broadcast %cst_21 : f32 to vector<16x8xf32>
    %32 = arith.cmpf ogt, %30, %31 : vector<16x8xf32>
    %33 = math.exp %30 : vector<16x8xf32>
    %cst_22 = arith.constant 1.000000e+00 : f32
    %34 = vector.broadcast %cst_22 : f32 to vector<16x8xf32>
    %35 = arith.subf %33, %34 : vector<16x8xf32>
    %36 = arith.select %32, %30, %35 : vector<16x8xi1>, vector<16x8xf32>
    %c0_23 = arith.constant 0 : index
    %c0_24 = arith.constant 0 : index
    %37 = vector.load %arg8[%c0_23, %c0_24] : memref<32x16xf32, #tpu.memory_space<vmem>>, vector<32x16xf32>
    %cst_25 = arith.constant dense<0.000000e+00> : vector<32x8xf32>
    %38 = tpu.matmul %37, %36, %cst_25 {dimension_numbers = #tpu.dot_dimension_numbers<[1], [0], [0], [1], [0, 0, 1, 1], [], []>} : vector<32x16xf32>, vector<16x8xf32>, vector<32x8xf32> -> vector<32x8xf32>
    %c0_26 = arith.constant 0 : index
    %c0_27 = arith.constant 0 : index
    %39 = vector.load %arg9[%c0_26, %c0_27] : memref<32x1xf32, #tpu.memory_space<vmem>>, vector<32x1xf32>
    %40 = vector.broadcast %39 : vector<32x1xf32> to vector<32x8xf32>
    %41 = arith.addf %38, %40 : vector<32x8xf32>
    %cst_28 = arith.constant -6.000000e+01 : f32
    %42 = vector.broadcast %cst_28 : f32 to vector<32x8xf32>
    %43 = arith.maximumf %41, %42 : vector<32x8xf32>
    %cst_29 = arith.constant 0.000000e+00 : f32
    %44 = vector.broadcast %cst_29 : f32 to vector<32x8xf32>
    %45 = arith.subf %44, %43 : vector<32x8xf32>
    %46 = math.exp %45 : vector<32x8xf32>
    %cst_30 = arith.constant 1.000000e+00 : f32
    %47 = vector.broadcast %cst_30 : f32 to vector<32x8xf32>
    %48 = arith.addf %47, %46 : vector<32x8xf32>
    %cst_31 = arith.constant 1.000000e+00 : f32
    %49 = vector.broadcast %cst_31 : f32 to vector<32x8xf32>
    %50 = arith.divf %49, %48 : vector<32x8xf32>
    %c0_32 = arith.constant 0 : index
    %c0_33 = arith.constant 0 : index
    %51 = vector.load %arg10[%c0_32, %c0_33] : memref<32x8xf32, #tpu.memory_space<vmem>>, vector<32x8xf32>
    tpu.vector_store %arg10[%c0_32, %c0_33], %50 {strides = array<i32>} : memref<32x8xf32, #tpu.memory_space<vmem>>, vector<32x8xf32>,
    return
  }
  func.func @transform_0(%arg0: i32) -> (i32, i32) {
    %c0_i32 = arith.constant 0 : i32
    %c0_i32_0 = arith.constant 0 : i32
    return %c0_i32, %arg0 : i32, i32
  }
  func.func @transform_1(%arg0: i32) -> (i32, i32) {
    %c0_i32 = arith.constant 0 : i32
    %c0_i32_0 = arith.constant 0 : i32
    %c0_i32_1 = arith.constant 0 : i32
    return %c0_i32, %c0_i32_0 : i32, i32
  }
  func.func @transform_2(%arg0: i32) -> (i32, i32) {
    %c0_i32 = arith.constant 0 : i32
    %c0_i32_0 = arith.constant 0 : i32
    %c0_i32_1 = arith.constant 0 : i32
    return %c0_i32, %c0_i32_0 : i32, i32
  }
  func.func @transform_3(%arg0: i32) -> (i32, i32) {
    %c0_i32 = arith.constant 0 : i32
    %c0_i32_0 = arith.constant 0 : i32
    %c0_i32_1 = arith.constant 0 : i32
    return %c0_i32, %c0_i32_0 : i32, i32
  }
  func.func @transform_4(%arg0: i32) -> (i32, i32) {
    %c0_i32 = arith.constant 0 : i32
    %c0_i32_0 = arith.constant 0 : i32
    %c0_i32_1 = arith.constant 0 : i32
    return %c0_i32, %c0_i32_0 : i32, i32
  }
  func.func @transform_5(%arg0: i32) -> (i32, i32) {
    %c0_i32 = arith.constant 0 : i32
    %c0_i32_0 = arith.constant 0 : i32
    %c0_i32_1 = arith.constant 0 : i32
    return %c0_i32, %c0_i32_0 : i32, i32
  }
  func.func @transform_6(%arg0: i32) -> (i32, i32) {
    %c0_i32 = arith.constant 0 : i32
    %c0_i32_0 = arith.constant 0 : i32
    %c0_i32_1 = arith.constant 0 : i32
    return %c0_i32, %c0_i32_0 : i32, i32
  }
  func.func @transform_7(%arg0: i32) -> (i32, i32) {
    %c0_i32 = arith.constant 0 : i32
    %c0_i32_0 = arith.constant 0 : i32
    %c0_i32_1 = arith.constant 0 : i32
    return %c0_i32, %c0_i32_0 : i32, i32
  }
  func.func @transform_8(%arg0: i32) -> (i32, i32) {
    %c0_i32 = arith.constant 0 : i32
    %c0_i32_0 = arith.constant 0 : i32
    %c0_i32_1 = arith.constant 0 : i32
    return %c0_i32, %c0_i32_0 : i32, i32
  }
  func.func @transform_9(%arg0: i32) -> (i32, i32) {
    %c0_i32 = arith.constant 0 : i32
    %c0_i32_0 = arith.constant 0 : i32
    return %c0_i32, %arg0 : i32, i32
  }
}

</mosaic_0001>

<llo_original>
// kernel: tpu_custom_call.1
$region0: #{tpu_custom_call.1}
  #allocation0 [shape = 'u32[]', space=smem, size = 0x4, offset = 0x4, fixed_abs, tag = 'smem constant byte address 0x4 - core index']
  #allocation1 [shape = 'u32[72,128]{1,0:T(1,128)}', space=vmem, size = 0x9000, scoped, tag = 'internal scratch']
  %s0 = inlined_call_operand.vmem [shape: f32[32,8], index: 0, kind: input, shape index: {}]
  %s1 = inlined_call_operand.vmem [shape: f32[16,32], index: 1, kind: input, shape index: {}]
  %s2 = inlined_call_operand.vmem [shape: f32[16,1], index: 2, kind: input, shape index: {}]
  %s3 = inlined_call_operand.vmem [shape: f32[8,16], index: 3, kind: input, shape index: {}]
  %s4 = inlined_call_operand.vmem [shape: f32[8,1], index: 4, kind: input, shape index: {}]
  %s5 = inlined_call_operand.vmem [shape: f32[16,8], index: 5, kind: input, shape index: {}]
  %s6 = inlined_call_operand.vmem [shape: f32[16,1], index: 6, kind: input, shape index: {}]
  %s7 = inlined_call_operand.vmem [shape: f32[32,16], index: 7, kind: input, shape index: {}]
  %s8 = inlined_call_operand.vmem [shape: f32[32,1], index: 8, kind: input, shape index: {}]
  %s9 = inlined_call_operand.vmem [shape: f32[32,8], index: 9, kind: output, shape index: {}]
  %s10 = sld [smem:[#allocation0]]
  $region46: #{tpu_custom_call.1} parent=0
    _
  %s12 = ssub.s32 1, %s10
  %s13 = scalar_select 0, %s12, %s10
  // Predicated region
  $region2: #{tpu_custom_call.1} parent=0 // pred_check
    _
  $region3: #{tpu_custom_call.1} parent=0 // pred_check_branch
    %15 = sbr.rel (0) target = $region5
  $region4: #{tpu_custom_call.1} parent=0 // pred_region
    _
  $region5: #{tpu_custom_call.1} parent=0 // pred_fallthru
    _
  // Predicated region
  $region6: #{tpu_custom_call.1} parent=0 // pred_check
    _
  $region7: #{tpu_custom_call.1} parent=0 // pred_check_branch
    %17 = sbr.rel (0) target = $region9
  $region8: #{tpu_custom_call.1} parent=0 // pred_region
    _
  $region9: #{tpu_custom_call.1} parent=0 // pred_fallthru
    _
  // Predicated region
  $region10: #{tpu_custom_call.1} parent=0 // pred_check
    _
  $region11: #{tpu_custom_call.1} parent=0 // pred_check_branch
    %19 = sbr.rel (0) target = $region13
  $region12: #{tpu_custom_call.1} parent=0 // pred_region
    _
  $region13: #{tpu_custom_call.1} parent=0 // pred_fallthru
    _
  // Predicated region
  $region14: #{tpu_custom_call.1} parent=0 // pred_check
    _
  $region15: #{tpu_custom_call.1} parent=0 // pred_check_branch
    %21 = sbr.rel (0) target = $region17
  $region16: #{tpu_custom_call.1} parent=0 // pred_region
    _
  $region17: #{tpu_custom_call.1} parent=0 // pred_fallthru
    _
  // Predicated region
  $region18: #{tpu_custom_call.1} parent=0 // pred_check
    _
  $region19: #{tpu_custom_call.1} parent=0 // pred_check_branch
    %23 = sbr.rel (0) target = $region21
  $region20: #{tpu_custom_call.1} parent=0 // pred_region
    _
  $region21: #{tpu_custom_call.1} parent=0 // pred_fallthru
    _
  // Predicated region
  $region22: #{tpu_custom_call.1} parent=0 // pred_check
    _
  $region23: #{tpu_custom_call.1} parent=0 // pred_check_branch
    %25 = sbr.rel (0) target = $region25
  $region24: #{tpu_custom_call.1} parent=0 // pred_region
    _
  $region25: #{tpu_custom_call.1} parent=0 // pred_fallthru
    _
  // Predicated region
  $region26: #{tpu_custom_call.1} parent=0 // pred_check
    _
  $region27: #{tpu_custom_call.1} parent=0 // pred_check_branch
    %27 = sbr.rel (0) target = $region29
  $region28: #{tpu_custom_call.1} parent=0 // pred_region
    _
  $region29: #{tpu_custom_call.1} parent=0 // pred_fallthru
    _
  // Predicated region
  $region30: #{tpu_custom_call.1} parent=0 // pred_check
    _
  $region31: #{tpu_custom_call.1} parent=0 // pred_check_branch
    %29 = sbr.rel (0) target = $region33
  $region32: #{tpu_custom_call.1} parent=0 // pred_region
    _
  $region33: #{tpu_custom_call.1} parent=0 // pred_fallthru
    _
  // Predicated region
  $region34: #{tpu_custom_call.1} parent=0 // pred_check
    _
  $region35: #{tpu_custom_call.1} parent=0 // pred_check_branch
    %31 = sbr.rel (0) target = $region37
  $region36: #{tpu_custom_call.1} parent=0 // pred_region
    _
  $region37: #{tpu_custom_call.1} parent=0 // pred_fallthru
    _
  %v32 = vld [vmem:[%s0] sm:$0xff]
  %v33 = vld [vmem:[%s0 + $0x8] sm:$0xff]
  %v34 = vld [vmem:[%s0 + $0x10] sm:$0xff]
  %v35 = vld [vmem:[%s0 + $0x18] sm:$0xff]
  %v36 = vld [vmem:[%s1] sm:$0xff]
  %v37 = vld [vmem:[%s1 + $0x8] sm:$0xff]
  %v38 = vld [vmem:[%s2] sm:$0xff]
  %v39 = vld [vmem:[%s2 + $0x8] sm:$0xff]
  %41 = vset.pattern.permute.xlu0 0
  %42 = vperm.xlu0 %41, %v38
  %v43 = vpop.permute.xlu0 %42
  %46 = vset.pattern.permute.xlu0 0
  %47 = vperm.xlu0 %46, %v39
  %v48 = vpop.permute.xlu0 %47
  %vm50 = vcmask 261120
  %v52 = vsel %vm50, %v36, 0
  %v55 = vsel %vm50, %v37, 0
  %57 = vmatpush.msra.mxu0 0.0
  %58 = vmatpush.msra.mxu0 0.0
  %59 = vmatpush.msra.mxu0 0.0
  %60 = vmatpush.msra.mxu0 0.0
  %61 = vmatpush.msra.mxu0 0.0
  %62 = vmatpush.msra.mxu0 0.0
  %63 = vmatpush.msra.mxu0 0.0
  %64 = vmatpush.msra.mxu0 0.0
  %65 = vmatpush.msra.mxu0 0.0
  %66 = vmatpush.msra.mxu0 0.0
  %67 = vmatpush.msra.mxu0 0.0
  %68 = vmatpush.msra.mxu0 0.0
  %69 = vmatpush.msra.mxu0 %v35
  %70 = vmatpush.msra.mxu0 %v34
  %71 = vmatpush.msra.mxu0 %v33
  %72 = vmatpush.msra.mxu0 %v32
  %73 = vmatmul.f32.gmra.mxu0 %v52
  %v74 = vpop.f32.mrf.mxu0
  %v75 = vadd.f32 %v43, %v74
  %76 = vmatmul.f32.gmra.mxu0 %v55
  %v77 = vpop.f32.mrf.mxu0
  %v78 = vadd.f32 %v48, %v77
  %79 = vdwg.mxu0
  %vm80 = vcmp.gt.f32.partialorder %v75, 0.0
  %vm81 = vcmp.gt.f32.partialorder %v78, 0.0
  %v82 = vmul.f32 %v75, 1.442695
  %v83 = vpow.pop %v82
  %v84 = vmul.f32 %v78, 1.442695
  %v85 = vpow.pop %v84
  %v86 = vsub.f32 %v83, 1.0
  %v87 = vsub.f32 %v85, 1.0
  %v88 = vsel %vm80, %v75, %v86
  %v89 = vsel %vm81, %v78, %v87
  %v90 = vld [vmem:[%s3] sm:$0xff]
  %v91 = vld [vmem:[%s4] sm:$0xff]
  %93 = vset.pattern.permute.xlu0 0
  %94 = vperm.xlu0 %93, %v91
  %v95 = vpop.permute.xlu0 %94
  %vm97 = vcmask 130048
  %v99 = vsel %vm97, %v90, 0
  %101 = vmatpush.msra.mxu0 0.0
  %102 = vmatpush.msra.mxu0 0.0
  %103 = vmatpush.msra.mxu0 0.0
  %104 = vmatpush.msra.mxu0 0.0
  %105 = vmatpush.msra.mxu0 0.0
  %106 = vmatpush.msra.mxu0 0.0
  %107 = vmatpush.msra.mxu0 0.0
  %108 = vmatpush.msra.mxu0 0.0
  %109 = vmatpush.msra.mxu0 0.0
  %110 = vmatpush.msra.mxu0 0.0
  %111 = vmatpush.msra.mxu0 0.0
  %112 = vmatpush.msra.mxu0 0.0
  %113 = vmatpush.msra.mxu0 0.0
  %114 = vmatpush.msra.mxu0 0.0
  %115 = vmatpush.msra.mxu0 %v89
  %116 = vmatpush.msra.mxu0 %v88
  %117 = vmatmul.f32.gmra.mxu0 %v99
  %v118 = vpop.f32.mrf.mxu0
  %v119 = vadd.f32 %v95, %v118
  %120 = vdwg.mxu0
  %v121 = vmax.f32 %v119, -60.0
  %v122 = vsub.f32 0.0, %v121
  %v123 = vmul.f32 %v122, 1.442695
  %v124 = vpow.pop %v123
  %v125 = vadd.f32 %v124, 1.0
  %v126 = vrcp.pop %v125
  %v127 = vmul.f32 %v125, %v126
  %v128 = vsub.f32 1.0, %v127
  %v129 = vmul.f32 %v126, %v128
  %v130 = vadd.f32 %v126, %v129
  %vm131 = vweird.f32 %v125
  %vm132 = vweird.f32 %v126
  %vm133 = vmor %vm131, %vm132
  %v134 = vsel %vm133, %v126, %v130
  %v135 = vand.u32 2147483647, %v125
  %vm136 = vcmp.eq.f32.partialorder %v135, 8.507059e+37
  %v137 = vand.u32 %v125, 2147483648
  %v138 = vor.u32 1.1754944e-38, %v137
  %v139 = vsel %vm136, %v138, %v134
  %v140 = vmul.f32 1.0, %v139
  %v141 = vld [vmem:[%s5] sm:$0xff]
  %v142 = vld [vmem:[%s5 + $0x8] sm:$0xff]
  %v143 = vld [vmem:[%s6] sm:$0xff]
  %v144 = vld [vmem:[%s6 + $0x8] sm:$0xff]
  %146 = vset.pattern.permute.xlu0 0
  %147 = vperm.xlu0 %146, %v143
  %v148 = vpop.permute.xlu0 %147
  %151 = vset.pattern.permute.xlu0 0
  %152 = vperm.xlu0 %151, %v144
  %v153 = vpop.permute.xlu0 %152
  %vm155 = vcmask 64512
  %v157 = vsel %vm155, %v141, 0
  %v160 = vsel %vm155, %v142, 0
  %162 = vmatpush.msra.mxu0 0.0
  %163 = vmatpush.msra.mxu0 0.0
  %164 = vmatpush.msra.mxu0 0.0
  %165 = vmatpush.msra.mxu0 0.0
  %166 = vmatpush.msra.mxu0 0.0
  %167 = vmatpush.msra.mxu0 0.0
  %168 = vmatpush.msra.mxu0 0.0
  %169 = vmatpush.msra.mxu0 0.0
  %170 = vmatpush.msra.mxu0 0.0
  %171 = vmatpush.msra.mxu0 0.0
  %172 = vmatpush.msra.mxu0 0.0
  %173 = vmatpush.msra.mxu0 0.0
  %174 = vmatpush.msra.mxu0 0.0
  %175 = vmatpush.msra.mxu0 0.0
  %176 = vmatpush.msra.mxu0 0.0
  %177 = vmatpush.msra.mxu0 %v140
  %178 = vmatmul.f32.gmra.mxu0 %v157
  %v179 = vpop.f32.mrf.mxu0
  %v180 = vadd.f32 %v148, %v179
  %181 = vmatmul.f32.gmra.mxu0 %v160
  %v182 = vpop.f32.mrf.mxu0
  %v183 = vadd.f32 %v153, %v182
  %184 = vdwg.mxu0
  %vm185 = vcmp.gt.f32.partialorder %v180, 0.0
  %vm186 = vcmp.gt.f32.partialorder %v183, 0.0
  %v187 = vmul.f32 %v180, 1.442695
  %v188 = vpow.pop %v187
  %v189 = vmul.f32 %v183, 1.442695
  %v190 = vpow.pop %v189
  %v191 = vsub.f32 %v188, 1.0
  %v192 = vsub.f32 %v190, 1.0
  %v193 = vsel %vm185, %v180, %v191
  %v194 = vsel %vm186, %v183, %v192
  %v195 = vld [vmem:[%s7] sm:$0xff]
  %v196 = vld [vmem:[%s7 + $0x8] sm:$0xff]
  %v197 = vld [vmem:[%s7 + $0x10] sm:$0xff]
  %v198 = vld [vmem:[%s7 + $0x18] sm:$0xff]
  %v199 = vld [vmem:[%s8] sm:$0xff]
  %v200 = vld [vmem:[%s8 + $0x8] sm:$0xff]
  %v201 = vld [vmem:[%s8 + $0x10] sm:$0xff]
  %v202 = vld [vmem:[%s8 + $0x18] sm:$0xff]
  %204 = vset.pattern.permute.xlu0 0
  %205 = vperm.xlu0 %204, %v199
  %v206 = vpop.permute.xlu0 %205
  %209 = vset.pattern.permute.xlu0 0
  %210 = vperm.xlu0 %209, %v200
  %v211 = vpop.permute.xlu0 %210
  %214 = vset.pattern.permute.xlu0 0
  %215 = vperm.xlu0 %214, %v201
  %v216 = vpop.permute.xlu0 %215
  %219 = vset.pattern.permute.xlu0 0
  %220 = vperm.xlu0 %219, %v202
  %v221 = vpop.permute.xlu0 %220
  %v224 = vsel %vm97, %v195, 0
  %v227 = vsel %vm97, %v196, 0
  %v230 = vsel %vm97, %v197, 0
  %v233 = vsel %vm97, %v198, 0
  %235 = vmatpush.msra.mxu0 0.0
  %236 = vmatpush.msra.mxu0 0.0
  %237 = vmatpush.msra.mxu0 0.0
  %238 = vmatpush.msra.mxu0 0.0
  %239 = vmatpush.msra.mxu0 0.0
  %240 = vmatpush.msra.mxu0 0.0
  %241 = vmatpush.msra.mxu0 0.0
  %242 = vmatpush.msra.mxu0 0.0
  %243 = vmatpush.msra.mxu0 0.0
  %244 = vmatpush.msra.mxu0 0.0
  %245 = vmatpush.msra.mxu0 0.0
  %246 = vmatpush.msra.mxu0 0.0
  %247 = vmatpush.msra.mxu0 0.0
  %248 = vmatpush.msra.mxu0 0.0
  %249 = vmatpush.msra.mxu0 %v194
  %250 = vmatpush.msra.mxu0 %v193
  %251 = vmatmul.f32.gmra.mxu0 %v224
  %v252 = vpop.f32.mrf.mxu0
  %v253 = vadd.f32 %v206, %v252
  %254 = vmatmul.f32.gmra.mxu0 %v227
  %v255 = vpop.f32.mrf.mxu0
  %v256 = vadd.f32 %v211, %v255
  %257 = vmatmul.f32.gmra.mxu0 %v230
  %v258 = vpop.f32.mrf.mxu0
  %v259 = vadd.f32 %v216, %v258
  %260 = vmatmul.f32.gmra.mxu0 %v233
  %v261 = vpop.f32.mrf.mxu0
  %v262 = vadd.f32 %v221, %v261
  %263 = vdwg.mxu0
  %v264 = vmax.f32 %v253, -60.0
  %v265 = vmax.f32 %v256, -60.0
  %v266 = vmax.f32 %v259, -60.0
  %v267 = vmax.f32 %v262, -60.0
  %v268 = vsub.f32 0.0, %v264
  %v269 = vsub.f32 0.0, %v265
  %v270 = vsub.f32 0.0, %v266
  %v271 = vsub.f32 0.0, %v267
  %v272 = vmul.f32 %v268, 1.442695
  %v273 = vpow.pop %v272
  %v274 = vmul.f32 %v269, 1.442695
  %v275 = vpow.pop %v274
  %v276 = vmul.f32 %v270, 1.442695
  %v277 = vpow.pop %v276
  %v278 = vmul.f32 %v271, 1.442695
  %v279 = vpow.pop %v278
  %v280 = vadd.f32 %v273, 1.0
  %v281 = vadd.f32 %v275, 1.0
  %v282 = vadd.f32 %v277, 1.0
  %v283 = vadd.f32 %v279, 1.0
  %v284 = vrcp.pop %v280
  %v285 = vmul.f32 %v280, %v284
  %v286 = vsub.f32 1.0, %v285
  %v287 = vmul.f32 %v284, %v286
  %v288 = vadd.f32 %v284, %v287
  %vm289 = vweird.f32 %v280
  %vm290 = vweird.f32 %v284
  %vm291 = vmor %vm289, %vm290
  %v292 = vsel %vm291, %v284, %v288
  %v293 = vand.u32 2147483647, %v280
  %vm294 = vcmp.eq.f32.partialorder %v293, 8.507059e+37
  %v295 = vand.u32 %v280, 2147483648
  %v296 = vor.u32 1.1754944e-38, %v295
  %v297 = vsel %vm294, %v296, %v292
  %v298 = vmul.f32 1.0, %v297
  %v299 = vrcp.pop %v281
  %v300 = vmul.f32 %v281, %v299
  %v301 = vsub.f32 1.0, %v300
  %v302 = vmul.f32 %v299, %v301
  %v303 = vadd.f32 %v299, %v302
  %vm304 = vweird.f32 %v281
  %vm305 = vweird.f32 %v299
  %vm306 = vmor %vm304, %vm305
  %v307 = vsel %vm306, %v299, %v303
  %v308 = vand.u32 2147483647, %v281
  %vm309 = vcmp.eq.f32.partialorder %v308, 8.507059e+37
  %v310 = vand.u32 %v281, 2147483648
  %v311 = vor.u32 1.1754944e-38, %v310
  %v312 = vsel %vm309, %v311, %v307
  %v313 = vmul.f32 1.0, %v312
  %v314 = vrcp.pop %v282
  %v315 = vmul.f32 %v282, %v314
  %v316 = vsub.f32 1.0, %v315
  %v317 = vmul.f32 %v314, %v316
  %v318 = vadd.f32 %v314, %v317
  %vm319 = vweird.f32 %v282
  %vm320 = vweird.f32 %v314
  %vm321 = vmor %vm319, %vm320
  %v322 = vsel %vm321, %v314, %v318
  %v323 = vand.u32 2147483647, %v282
  %vm324 = vcmp.eq.f32.partialorder %v323, 8.507059e+37
  %v325 = vand.u32 %v282, 2147483648
  %v326 = vor.u32 1.1754944e-38, %v325
  %v327 = vsel %vm324, %v326, %v322
  %v328 = vmul.f32 1.0, %v327
  %v329 = vrcp.pop %v283
  %v330 = vmul.f32 %v283, %v329
  %v331 = vsub.f32 1.0, %v330
  %v332 = vmul.f32 %v329, %v331
  %v333 = vadd.f32 %v329, %v332
  %vm334 = vweird.f32 %v283
  %vm335 = vweird.f32 %v329
  %vm336 = vmor %vm334, %vm335
  %v337 = vsel %vm336, %v329, %v333
  %v338 = vand.u32 2147483647, %v283
  %vm339 = vcmp.eq.f32.partialorder %v338, 8.507059e+37
  %v340 = vand.u32 %v283, 2147483648
  %v341 = vor.u32 1.1754944e-38, %v340
  %v342 = vsel %vm339, %v341, %v337
  %v343 = vmul.f32 1.0, %v342
  %344 = vst.msk [vmem:[%s9] sm:$0xff] %vm155, %v298
  %345 = vst.msk [vmem:[%s9 + $0x8] sm:$0xff] %vm155, %v313
  %346 = vst.msk [vmem:[%s9 + $0x10] sm:$0xff] %vm155, %v328
  %347 = vst.msk [vmem:[%s9 + $0x18] sm:$0xff] %vm155, %v343
  // Predicated region
  $region38: #{tpu_custom_call.1} parent=0 // pred_check
    _
  $region39: #{tpu_custom_call.1} parent=0 // pred_check_branch
    %349 = sbr.rel (0) target = $region41
  $region40: #{tpu_custom_call.1} parent=0 // pred_region
    _
  $region41: #{tpu_custom_call.1} parent=0 // pred_fallthru
    _
  // Predicated region
  $region42: #{tpu_custom_call.1} parent=0 // pred_check
    _
  $region43: #{tpu_custom_call.1} parent=0 // pred_check_branch
    %351 = sbr.rel (0) target = $region45
  $region44: #{tpu_custom_call.1} parent=0 // pred_region
    _
  $region45: #{tpu_custom_call.1} parent=0 // pred_fallthru
    _

</llo_original>
